<compile_context>
chip_gen: v5e
topology: v5e:2x2
jax: 0.10.0
libtpu: 0.0.40
codegen_flags: <defaults>
</compile_context>

<pallas_src>
import jax
import jax.numpy as jnp
from jax import lax
from jax.experimental import pallas as pl
from jax.experimental.pallas import tpu as pltpu

_VMEM_LIMIT_BYTES = 64 * 1024 * 1024      # explicit scoped-VMEM limit (all chips)
_VMEM_BUDGET_BYTES = 40 * 1024 * 1024     # tile-sizing target (headroom under limit)


def _round_up(x, m):
    return (x + m - 1) // m * m


# ----------------------------------------------------------------------------
# Fused kernel: QKV projections + cosine attention + residual (one batch tile)
# ----------------------------------------------------------------------------
def _mma_kernel(src_ref, wq_ref, bq_ref, wk_ref, bk_ref, wv_ref, bv_ref, out_ref):
    """
    Lane-dense (batch-on-lanes) fused QKV + cosine attention + residual.

    src_ref : (3, F, Bt)  modality-major; feature on sublanes, batch on lanes
    w*_ref  : (3, F, F)   per-modality projection weights (PyTorch (out, in))
    b*_ref  : (3, F, 1)   per-modality biases (column vectors)
    out_ref : (3, F, Bt)  src + att0 * (audio_v + text_v + visual_v)
    """
    eps = 1e-6

    # ---- Pass 1: keys (+ squared norms) and the value-sum for all 3 modalities.
    ks, kn2 = [], []
    vsum = None
    for m in range(3):
        x = src_ref[m]                                                 # (F, Bt)
        k = jnp.dot(wk_ref[m], x, preferred_element_type=jnp.float32) + bk_ref[m]
        v = jnp.dot(wv_ref[m], x, preferred_element_type=jnp.float32) + bv_ref[m]
        ks.append(k)
        kn2.append(jnp.sum(k * k, axis=0, keepdims=True))              # (1, Bt)
        vsum = v if vsum is None else vsum + v                         # (F, Bt)

    # ---- Pass 2: per query-modality attention weight + residual output.
    for m in range(3):
        x = src_ref[m]
        q = jnp.dot(wq_ref[m], x, preferred_element_type=jnp.float32) + bq_ref[m]
        qn2 = jnp.sum(q * q, axis=0, keepdims=True)                    # (1, Bt)
        # cos(q, k_j) = <q, k_j> / max(||q||*||k_j||, eps)
        #             = <q, k_j> * rsqrt(max(||q||^2 * ||k_j||^2, eps^2))
        c = [jnp.sum(q * ks[j], axis=0, keepdims=True)
             * lax.rsqrt(jnp.maximum(qn2 * kn2[j], eps * eps))
             for j in range(3)]
        # Softmax over the 3 key modalities; the original module multiplies
        # every value term by att[:, 0] (the audio-key column), so the value
        # mix collapses to att0 * (audio_v + text_v + visual_v).  Softmax is
        # permutation-invariant over the key set, so only the audio numerator
        # matters -- that is c[0] here (modality 0 = audio).
        row_max = jnp.maximum(jnp.maximum(c[0], c[1]), c[2])
        e0 = jnp.exp(c[0] - row_max)
        e1 = jnp.exp(c[1] - row_max)
        e2 = jnp.exp(c[2] - row_max)
        att0 = e0 / (e0 + e1 + e2)                                     # (1, Bt)
        # dropout1 is identity (eval semantics).
        out_ref[m] = x + att0 * vsum


# ----------------------------------------------------------------------------
# Wrapper
# ----------------------------------------------------------------------------
def multimodal_attention(src, params, *, block_b=None, interpret=False):
    """src: (3, B, F) float32.  params: dict of the 9 Linear weights/biases."""
    S, B, F = src.shape
    assert S == 3, "src must be (3, batch, feat): audio / text / visual"

    # Per-modality stacks in the transposed layout: y^T = W @ x^T + b (PyTorch
    # Linear is y = x @ W^T + b with W of shape (out, in), so W is used as-is).
    mods = [("aq", "ak", "av"),   # modality 0: audio
            ("tq", "tk", "tv"),   # modality 1: text
            ("vq", "vk", "vv")]   # modality 2: visual

    def stack_w(i):
        return jnp.stack([params[mods[m][i] + "_w"] for m in range(3)], axis=0)

    def stack_b(i):
        return jnp.stack([params[mods[m][i] + "_b"].reshape(F, 1)
                          for m in range(3)], axis=0)

    wq, wk, wv = stack_w(0), stack_w(1), stack_w(2)      # (3, F, F) each
    bq, bk, bv = stack_b(0), stack_b(1), stack_b(2)      # (3, F, 1) each

    # Lane-dense layout: put the (streamed, large) batch axis on the 128 lanes.
    src_t = jnp.transpose(src, (0, 2, 1)).astype(jnp.float32)          # (3, F, B)

    # ---- Batch tile sizing -------------------------------------------------
    Bp128 = _round_up(B, 128)
    if block_b is None:
        weight_bytes = 2 * (9 * F * F + 3 * F) * 4          # 2 pipeline buffers
        col_bytes = (4 * 3 * F + 8 * F) * 4                 # dbl-buffered I/O + live intermediates per batch column
        avail = _VMEM_BUDGET_BYTES - weight_bytes
        if avail > col_bytes * 128:
            block_b = min(2048, avail // col_bytes)
        else:
            block_b = 128
    bb = max(128, (int(block_b) // 128) * 128)               # multiple of 128 lanes
    bb = min(bb, Bp128)
    if Bp128 >= 256:
        # Keep >= 2 grid steps so both v7x TensorCores get work (harmless elsewhere).
        bb = min(bb, _round_up(Bp128 // 2, 128))
    Bp = _round_up(B, bb)
    if Bp != B:
        # Padded columns compute finite garbage independently; sliced off below.
        src_t = jnp.pad(src_t, ((0, 0), (0, 0), (0, Bp - B)))

    out_t = pl.pallas_call(
        _mma_kernel,
        out_shape=jax.ShapeDtypeStruct((3, F, Bp), jnp.float32),
        grid=(Bp // bb,),
        in_specs=[
            pl.BlockSpec((3, F, bb), lambda i: (0, 0, i)),     # src tile (streamed)
            pl.BlockSpec((3, F, F), lambda i: (0, 0, 0)),      # Wq (VMEM-resident)
            pl.BlockSpec((3, F, 1), lambda i: (0, 0, 0)),      # bq
            pl.BlockSpec((3, F, F), lambda i: (0, 0, 0)),      # Wk
            pl.BlockSpec((3, F, 1), lambda i: (0, 0, 0)),      # bk
            pl.BlockSpec((3, F, F), lambda i: (0, 0, 0)),      # Wv
            pl.BlockSpec((3, F, 1), lambda i: (0, 0, 0)),      # bv
        ],
        out_specs=pl.BlockSpec((3, F, bb), lambda i: (0, 0, i)),
        compiler_params=pltpu.CompilerParams(
            dimension_semantics=("parallel",),
            vmem_limit_bytes=_VMEM_LIMIT_BYTES,
        ),
        interpret=interpret,
    )(src_t, wq, bq, wk, bk, wv, bv)

    return jnp.transpose(out_t[:, :, :B], (0, 2, 1))


# ----------------------------------------------------------------------------
# Parameter init (matches nn.Linear default: U(-1/sqrt(in), 1/sqrt(in)))
# ----------------------------------------------------------------------------
def init_params(key, input_feat_size):
    F = input_feat_size
    bound = F ** -0.5
    names = ["aq", "vq", "tq", "ak", "vk", "tk", "av", "vv", "tv"]
    keys = jax.random.split(key, 2 * len(names))
    params = {}
    for i, n in enumerate(names):
        params[n + "_w"] = jax.random.uniform(keys[2 * i], (F, F), jnp.float32,
                                              -bound, bound)
        params[n + "_b"] = jax.random.uniform(keys[2 * i + 1], (F,), jnp.float32,
                                              -bound, bound)
    return params


# ----------------------------------------------------------------------------
# Pure-JAX reference mirroring the PyTorch forward exactly (for sanity check)
# ----------------------------------------------------------------------------
def _ref_forward(params, src):
    def lin(n, x):
        return x @ params[n + "_w"].T + params[n + "_b"]

    a, t, v = src[0], src[1], src[2]
    audio_q, visual_q, text_q = lin("aq", a), lin("vq", v), lin("tq", t)
    audio_k, visual_k, text_k = lin("ak", a), lin("vk", v), lin("tk", t)
    audio_v, visual_v, text_v = lin("av", a), lin("vv", v), lin("tv", t)

    def cos(x, y, eps=1e-6):
        num = jnp.sum(x * y, axis=1)
        den = jnp.maximum(jnp.sqrt(jnp.sum(x * x, axis=1) * jnp.sum(y * y, axis=1)),
                          eps)
        return num / den

    def att_row(q):
        m = jnp.stack([cos(q, audio_k), cos(q, visual_k), cos(q, text_k)], axis=1)
        return jax.nn.softmax(m, axis=1)

    a_att, v_att, t_att = att_row(audio_q), att_row(visual_q), att_row(text_q)
    vsum = audio_v + visual_v + text_v
    a_hat = a_att[:, 0:1] * vsum      # original module uses [:, 0] for all terms
    v_hat = v_att[:, 0:1] * vsum
    t_hat = t_att[:, 0:1] * vsum
    src2 = jnp.stack([a_hat, t_hat, v_hat], axis=0)
    return src + src2


if __name__ == "__main__":
    # Small shapes consistent with the module: src is (seq=3, batch, feat).
    batch, input_feat_size = 8, 16
    nhidden, dropout = 32, 0.1        # defined in __init__ but unused in forward

    key = jax.random.PRNGKey(0)
    kp, kx = jax.random.split(key)
    params = init_params(kp, input_feat_size)
    src = jax.random.normal(kx, (3, batch, input_feat_size), dtype=jnp.float32)

    out = jax.jit(multimodal_attention)(src, params)
    jax.block_until_ready(out)

    ref = _ref_forward(params, src)
    assert out.shape == (3, batch, input_feat_size)
    assert jnp.allclose(out, ref, atol=1e-4, rtol=1e-4), \
        float(jnp.max(jnp.abs(out - ref)))

    print("KERNEL_OK")
</pallas_src>

<mosaic_0001>
module attributes {stable_mosaic.version = 11 : i64} {
  func.func @_mma_kernel(%arg0: i32, %arg1: memref<3x16x128xf32, #tpu.memory_space<vmem>>, %arg2: memref<3x16x16xf32, #tpu.memory_space<vmem>>, %arg3: memref<3x16x1xf32, #tpu.memory_space<vmem>>, %arg4: memref<3x16x16xf32, #tpu.memory_space<vmem>>, %arg5: memref<3x16x1xf32, #tpu.memory_space<vmem>>, %arg6: memref<3x16x16xf32, #tpu.memory_space<vmem>>, %arg7: memref<3x16x1xf32, #tpu.memory_space<vmem>>, %arg8: memref<3x16x128xf32, #tpu.memory_space<vmem>>) attributes {dimension_semantics = [#tpu.dimension_semantics<parallel>], iteration_bounds = array<i64: 1>, scalar_prefetch = 0 : i64, scratch_operands = 0 : i64, tpu.core_type = #tpu.core_type<tc>, window_params = [{transform_indices = @transform_0, window_bounds = array<i64: 3, 16, 128>}, {pipeline_mode = #tpu.pipeline_mode<synchronous>, transform_indices = @transform_1, window_bounds = array<i64: 3, 16, 16>}, {pipeline_mode = #tpu.pipeline_mode<synchronous>, transform_indices = @transform_2, window_bounds = array<i64: 3, 16, 1>}, {pipeline_mode = #tpu.pipeline_mode<synchronous>, transform_indices = @transform_3, window_bounds = array<i64: 3, 16, 16>}, {pipeline_mode = #tpu.pipeline_mode<synchronous>, transform_indices = @transform_4, window_bounds = array<i64: 3, 16, 1>}, {pipeline_mode = #tpu.pipeline_mode<synchronous>, transform_indices = @transform_5, window_bounds = array<i64: 3, 16, 16>}, {pipeline_mode = #tpu.pipeline_mode<synchronous>, transform_indices = @transform_6, window_bounds = array<i64: 3, 16, 1>}, {transform_indices = @transform_7, window_bounds = array<i64: 3, 16, 128>}]} {
    %c0 = arith.constant 0 : index
    %c0_0 = arith.constant 0 : index
    %c0_1 = arith.constant 0 : index
    %0 = vector.load %arg1[%c0, %c0_0, %c0_1] : memref<3x16x128xf32, #tpu.memory_space<vmem>>, vector<1x16x128xf32>
    %1 = vector.shape_cast %0 : vector<1x16x128xf32> to vector<16x128xf32>
    %c0_2 = arith.constant 0 : index
    %c0_3 = arith.constant 0 : index
    %c0_4 = arith.constant 0 : index
    %2 = vector.load %arg4[%c0_2, %c0_3, %c0_4] : memref<3x16x16xf32, #tpu.memory_space<vmem>>, vector<1x16x16xf32>
    %3 = vector.shape_cast %2 : vector<1x16x16xf32> to vector<16x16xf32>
    %cst = arith.constant dense<0.000000e+00> : vector<16x128xf32>
    %4 = tpu.matmul %3, %1, %cst {dimension_numbers = #tpu.dot_dimension_numbers<[1], [0], [0], [1], [0, 0, 1, 1], [], []>} : vector<16x16xf32>, vector<16x128xf32>, vector<16x128xf32> -> vector<16x128xf32>
    %c0_5 = arith.constant 0 : index
    %c0_6 = arith.constant 0 : index
    %c0_7 = arith.constant 0 : index
    %5 = vector.load %arg5[%c0_5, %c0_6, %c0_7] : memref<3x16x1xf32, #tpu.memory_space<vmem>>, vector<1x16x1xf32>
    %6 = vector.shape_cast %5 : vector<1x16x1xf32> to vector<16x1xf32>
    %7 = vector.broadcast %6 : vector<16x1xf32> to vector<16x128xf32>
    %8 = arith.addf %4, %7 : vector<16x128xf32>
    %c0_8 = arith.constant 0 : index
    %c0_9 = arith.constant 0 : index
    %c0_10 = arith.constant 0 : index
    %9 = vector.load %arg6[%c0_8, %c0_9, %c0_10] : memref<3x16x16xf32, #tpu.memory_space<vmem>>, vector<1x16x16xf32>
    %10 = vector.shape_cast %9 : vector<1x16x16xf32> to vector<16x16xf32>
    %cst_11 = arith.constant dense<0.000000e+00> : vector<16x128xf32>
    %11 = tpu.matmul %10, %1, %cst_11 {dimension_numbers = #tpu.dot_dimension_numbers<[1], [0], [0], [1], [0, 0, 1, 1], [], []>} : vector<16x16xf32>, vector<16x128xf32>, vector<16x128xf32> -> vector<16x128xf32>
    %c0_12 = arith.constant 0 : index
    %c0_13 = arith.constant 0 : index
    %c0_14 = arith.constant 0 : index
    %12 = vector.load %arg7[%c0_12, %c0_13, %c0_14] : memref<3x16x1xf32, #tpu.memory_space<vmem>>, vector<1x16x1xf32>
    %13 = vector.shape_cast %12 : vector<1x16x1xf32> to vector<16x1xf32>
    %14 = vector.broadcast %13 : vector<16x1xf32> to vector<16x128xf32>
    %15 = arith.addf %11, %14 : vector<16x128xf32>
    %16 = arith.mulf %8, %8 : vector<16x128xf32>
    %cst_15 = arith.constant dense<0.000000e+00> : vector<128xf32>
    %17 = vector.multi_reduction <add>, %16, %cst_15 [0] : vector<16x128xf32> to vector<128xf32>
    %18 = vector.shape_cast %17 : vector<128xf32> to vector<1x128xf32>
    %c1 = arith.constant 1 : index
    %c0_16 = arith.constant 0 : index
    %c0_17 = arith.constant 0 : index
    %19 = vector.load %arg1[%c1, %c0_16, %c0_17] : memref<3x16x128xf32, #tpu.memory_space<vmem>>, vector<1x16x128xf32>
    %20 = vector.shape_cast %19 : vector<1x16x128xf32> to vector<16x128xf32>
    %c1_18 = arith.constant 1 : index
    %c0_19 = arith.constant 0 : index
    %c0_20 = arith.constant 0 : index
    %21 = vector.load %arg4[%c1_18, %c0_19, %c0_20] : memref<3x16x16xf32, #tpu.memory_space<vmem>>, vector<1x16x16xf32>
    %22 = vector.shape_cast %21 : vector<1x16x16xf32> to vector<16x16xf32>
    %cst_21 = arith.constant dense<0.000000e+00> : vector<16x128xf32>
    %23 = tpu.matmul %22, %20, %cst_21 {dimension_numbers = #tpu.dot_dimension_numbers<[1], [0], [0], [1], [0, 0, 1, 1], [], []>} : vector<16x16xf32>, vector<16x128xf32>, vector<16x128xf32> -> vector<16x128xf32>
    %c1_22 = arith.constant 1 : index
    %c0_23 = arith.constant 0 : index
    %c0_24 = arith.constant 0 : index
    %24 = vector.load %arg5[%c1_22, %c0_23, %c0_24] : memref<3x16x1xf32, #tpu.memory_space<vmem>>, vector<1x16x1xf32>
    %25 = vector.shape_cast %24 : vector<1x16x1xf32> to vector<16x1xf32>
    %26 = vector.broadcast %25 : vector<16x1xf32> to vector<16x128xf32>
    %27 = arith.addf %23, %26 : vector<16x128xf32>
    %c1_25 = arith.constant 1 : index
    %c0_26 = arith.constant 0 : index
    %c0_27 = arith.constant 0 : index
    %28 = vector.load %arg6[%c1_25, %c0_26, %c0_27] : memref<3x16x16xf32, #tpu.memory_space<vmem>>, vector<1x16x16xf32>
    %29 = vector.shape_cast %28 : vector<1x16x16xf32> to vector<16x16xf32>
    %cst_28 = arith.constant dense<0.000000e+00> : vector<16x128xf32>
    %30 = tpu.matmul %29, %20, %cst_28 {dimension_numbers = #tpu.dot_dimension_numbers<[1], [0], [0], [1], [0, 0, 1, 1], [], []>} : vector<16x16xf32>, vector<16x128xf32>, vector<16x128xf32> -> vector<16x128xf32>
    %c1_29 = arith.constant 1 : index
    %c0_30 = arith.constant 0 : index
    %c0_31 = arith.constant 0 : index
    %31 = vector.load %arg7[%c1_29, %c0_30, %c0_31] : memref<3x16x1xf32, #tpu.memory_space<vmem>>, vector<1x16x1xf32>
    %32 = vector.shape_cast %31 : vector<1x16x1xf32> to vector<16x1xf32>
    %33 = vector.broadcast %32 : vector<16x1xf32> to vector<16x128xf32>
    %34 = arith.addf %30, %33 : vector<16x128xf32>
    %35 = arith.mulf %27, %27 : vector<16x128xf32>
    %cst_32 = arith.constant dense<0.000000e+00> : vector<128xf32>
    %36 = vector.multi_reduction <add>, %35, %cst_32 [0] : vector<16x128xf32> to vector<128xf32>
    %37 = vector.shape_cast %36 : vector<128xf32> to vector<1x128xf32>
    %38 = arith.addf %15, %34 : vector<16x128xf32>
    %c2 = arith.constant 2 : index
    %c0_33 = arith.constant 0 : index
    %c0_34 = arith.constant 0 : index
    %39 = vector.load %arg1[%c2, %c0_33, %c0_34] : memref<3x16x128xf32, #tpu.memory_space<vmem>>, vector<1x16x128xf32>
    %40 = vector.shape_cast %39 : vector<1x16x128xf32> to vector<16x128xf32>
    %c2_35 = arith.constant 2 : index
    %c0_36 = arith.constant 0 : index
    %c0_37 = arith.constant 0 : index
    %41 = vector.load %arg4[%c2_35, %c0_36, %c0_37] : memref<3x16x16xf32, #tpu.memory_space<vmem>>, vector<1x16x16xf32>
    %42 = vector.shape_cast %41 : vector<1x16x16xf32> to vector<16x16xf32>
    %cst_38 = arith.constant dense<0.000000e+00> : vector<16x128xf32>
    %43 = tpu.matmul %42, %40, %cst_38 {dimension_numbers = #tpu.dot_dimension_numbers<[1], [0], [0], [1], [0, 0, 1, 1], [], []>} : vector<16x16xf32>, vector<16x128xf32>, vector<16x128xf32> -> vector<16x128xf32>
    %c2_39 = arith.constant 2 : index
    %c0_40 = arith.constant 0 : index
    %c0_41 = arith.constant 0 : index
    %44 = vector.load %arg5[%c2_39, %c0_40, %c0_41] : memref<3x16x1xf32, #tpu.memory_space<vmem>>, vector<1x16x1xf32>
    %45 = vector.shape_cast %44 : vector<1x16x1xf32> to vector<16x1xf32>
    %46 = vector.broadcast %45 : vector<16x1xf32> to vector<16x128xf32>
    %47 = arith.addf %43, %46 : vector<16x128xf32>
    %c2_42 = arith.constant 2 : index
    %c0_43 = arith.constant 0 : index
    %c0_44 = arith.constant 0 : index
    %48 = vector.load %arg6[%c2_42, %c0_43, %c0_44] : memref<3x16x16xf32, #tpu.memory_space<vmem>>, vector<1x16x16xf32>
    %49 = vector.shape_cast %48 : vector<1x16x16xf32> to vector<16x16xf32>
    %cst_45 = arith.constant dense<0.000000e+00> : vector<16x128xf32>
    %50 = tpu.matmul %49, %40, %cst_45 {dimension_numbers = #tpu.dot_dimension_numbers<[1], [0], [0], [1], [0, 0, 1, 1], [], []>} : vector<16x16xf32>, vector<16x128xf32>, vector<16x128xf32> -> vector<16x128xf32>
    %c2_46 = arith.constant 2 : index
    %c0_47 = arith.constant 0 : index
    %c0_48 = arith.constant 0 : index
    %51 = vector.load %arg7[%c2_46, %c0_47, %c0_48] : memref<3x16x1xf32, #tpu.memory_space<vmem>>, vector<1x16x1xf32>
    %52 = vector.shape_cast %51 : vector<1x16x1xf32> to vector<16x1xf32>
    %53 = vector.broadcast %52 : vector<16x1xf32> to vector<16x128xf32>
    %54 = arith.addf %50, %53 : vector<16x128xf32>
    %55 = arith.mulf %47, %47 : vector<16x128xf32>
    %cst_49 = arith.constant dense<0.000000e+00> : vector<128xf32>
    %56 = vector.multi_reduction <add>, %55, %cst_49 [0] : vector<16x128xf32> to vector<128xf32>
    %57 = vector.shape_cast %56 : vector<128xf32> to vector<1x128xf32>
    %58 = arith.addf %38, %54 : vector<16x128xf32>
    %c0_50 = arith.constant 0 : index
    %c0_51 = arith.constant 0 : index
    %c0_52 = arith.constant 0 : index
    %59 = vector.load %arg1[%c0_50, %c0_51, %c0_52] : memref<3x16x128xf32, #tpu.memory_space<vmem>>, vector<1x16x128xf32>
    %60 = vector.shape_cast %59 : vector<1x16x128xf32> to vector<16x128xf32>
    %c0_53 = arith.constant 0 : index
    %c0_54 = arith.constant 0 : index
    %c0_55 = arith.constant 0 : index
    %61 = vector.load %arg2[%c0_53, %c0_54, %c0_55] : memref<3x16x16xf32, #tpu.memory_space<vmem>>, vector<1x16x16xf32>
    %62 = vector.shape_cast %61 : vector<1x16x16xf32> to vector<16x16xf32>
    %cst_56 = arith.constant dense<0.000000e+00> : vector<16x128xf32>
    %63 = tpu.matmul %62, %60, %cst_56 {dimension_numbers = #tpu.dot_dimension_numbers<[1], [0], [0], [1], [0, 0, 1, 1], [], []>} : vector<16x16xf32>, vector<16x128xf32>, vector<16x128xf32> -> vector<16x128xf32>
    %c0_57 = arith.constant 0 : index
    %c0_58 = arith.constant 0 : index
    %c0_59 = arith.constant 0 : index
    %64 = vector.load %arg3[%c0_57, %c0_58, %c0_59] : memref<3x16x1xf32, #tpu.memory_space<vmem>>, vector<1x16x1xf32>
    %65 = vector.shape_cast %64 : vector<1x16x1xf32> to vector<16x1xf32>
    %66 = vector.broadcast %65 : vector<16x1xf32> to vector<16x128xf32>
    %67 = arith.addf %63, %66 : vector<16x128xf32>
    %68 = arith.mulf %67, %67 : vector<16x128xf32>
    %cst_60 = arith.constant dense<0.000000e+00> : vector<128xf32>
    %69 = vector.multi_reduction <add>, %68, %cst_60 [0] : vector<16x128xf32> to vector<128xf32>
    %70 = vector.shape_cast %69 : vector<128xf32> to vector<1x128xf32>
    %71 = arith.mulf %67, %8 : vector<16x128xf32>
    %cst_61 = arith.constant dense<0.000000e+00> : vector<128xf32>
    %72 = vector.multi_reduction <add>, %71, %cst_61 [0] : vector<16x128xf32> to vector<128xf32>
    %73 = vector.shape_cast %72 : vector<128xf32> to vector<1x128xf32>
    %74 = arith.mulf %70, %18 : vector<1x128xf32>
    %cst_62 = arith.constant 9.99999996E-13 : f32
    %75 = vector.broadcast %cst_62 : f32 to vector<1x128xf32>
    %76 = arith.maximumf %74, %75 : vector<1x128xf32>
    %77 = math.rsqrt %76 : vector<1x128xf32>
    %78 = arith.mulf %73, %77 : vector<1x128xf32>
    %79 = arith.mulf %67, %27 : vector<16x128xf32>
    %cst_63 = arith.constant dense<0.000000e+00> : vector<128xf32>
    %80 = vector.multi_reduction <add>, %79, %cst_63 [0] : vector<16x128xf32> to vector<128xf32>
    %81 = vector.shape_cast %80 : vector<128xf32> to vector<1x128xf32>
    %82 = arith.mulf %70, %37 : vector<1x128xf32>
    %cst_64 = arith.constant 9.99999996E-13 : f32
    %83 = vector.broadcast %cst_64 : f32 to vector<1x128xf32>
    %84 = arith.maximumf %82, %83 : vector<1x128xf32>
    %85 = math.rsqrt %84 : vector<1x128xf32>
    %86 = arith.mulf %81, %85 : vector<1x128xf32>
    %87 = arith.mulf %67, %47 : vector<16x128xf32>
    %cst_65 = arith.constant dense<0.000000e+00> : vector<128xf32>
    %88 = vector.multi_reduction <add>, %87, %cst_65 [0] : vector<16x128xf32> to vector<128xf32>
    %89 = vector.shape_cast %88 : vector<128xf32> to vector<1x128xf32>
    %90 = arith.mulf %70, %57 : vector<1x128xf32>
    %cst_66 = arith.constant 9.99999996E-13 : f32
    %91 = vector.broadcast %cst_66 : f32 to vector<1x128xf32>
    %92 = arith.maximumf %90, %91 : vector<1x128xf32>
    %93 = math.rsqrt %92 : vector<1x128xf32>
    %94 = arith.mulf %89, %93 : vector<1x128xf32>
    %95 = arith.maximumf %78, %86 : vector<1x128xf32>
    %96 = arith.maximumf %95, %94 : vector<1x128xf32>
    %97 = arith.subf %78, %96 : vector<1x128xf32>
    %98 = math.exp %97 : vector<1x128xf32>
    %99 = arith.subf %86, %96 : vector<1x128xf32>
    %100 = math.exp %99 : vector<1x128xf32>
    %101 = arith.subf %94, %96 : vector<1x128xf32>
    %102 = math.exp %101 : vector<1x128xf32>
    %103 = arith.addf %98, %100 : vector<1x128xf32>
    %104 = arith.addf %103, %102 : vector<1x128xf32>
    %105 = arith.divf %98, %104 : vector<1x128xf32>
    %106 = vector.broadcast %105 : vector<1x128xf32> to vector<16x128xf32>
    %107 = arith.mulf %106, %58 : vector<16x128xf32>
    %108 = arith.addf %60, %107 : vector<16x128xf32>
    %c0_67 = arith.constant 0 : index
    %c0_68 = arith.constant 0 : index
    %c0_69 = arith.constant 0 : index
    %109 = vector.load %arg8[%c0_67, %c0_68, %c0_69] : memref<3x16x128xf32, #tpu.memory_space<vmem>>, vector<1x16x128xf32>
    %110 = vector.shape_cast %109 : vector<1x16x128xf32> to vector<16x128xf32>
    %111 = vector.shape_cast %108 : vector<16x128xf32> to vector<1x16x128xf32>
    tpu.vector_store %arg8[%c0_67, %c0_68, %c0_69], %111 {strides = array<i32>} : memref<3x16x128xf32, #tpu.memory_space<vmem>>, vector<1x16x128xf32>,
    %c1_70 = arith.constant 1 : index
    %c0_71 = arith.constant 0 : index
    %c0_72 = arith.constant 0 : index
    %112 = vector.load %arg1[%c1_70, %c0_71, %c0_72] : memref<3x16x128xf32, #tpu.memory_space<vmem>>, vector<1x16x128xf32>
    %113 = vector.shape_cast %112 : vector<1x16x128xf32> to vector<16x128xf32>
    %c1_73 = arith.constant 1 : index
    %c0_74 = arith.constant 0 : index
    %c0_75 = arith.constant 0 : index
    %114 = vector.load %arg2[%c1_73, %c0_74, %c0_75] : memref<3x16x16xf32, #tpu.memory_space<vmem>>, vector<1x16x16xf32>
    %115 = vector.shape_cast %114 : vector<1x16x16xf32> to vector<16x16xf32>
    %cst_76 = arith.constant dense<0.000000e+00> : vector<16x128xf32>
    %116 = tpu.matmul %115, %113, %cst_76 {dimension_numbers = #tpu.dot_dimension_numbers<[1], [0], [0], [1], [0, 0, 1, 1], [], []>} : vector<16x16xf32>, vector<16x128xf32>, vector<16x128xf32> -> vector<16x128xf32>
    %c1_77 = arith.constant 1 : index
    %c0_78 = arith.constant 0 : index
    %c0_79 = arith.constant 0 : index
    %117 = vector.load %arg3[%c1_77, %c0_78, %c0_79] : memref<3x16x1xf32, #tpu.memory_space<vmem>>, vector<1x16x1xf32>
    %118 = vector.shape_cast %117 : vector<1x16x1xf32> to vector<16x1xf32>
    %119 = vector.broadcast %118 : vector<16x1xf32> to vector<16x128xf32>
    %120 = arith.addf %116, %119 : vector<16x128xf32>
    %121 = arith.mulf %120, %120 : vector<16x128xf32>
    %cst_80 = arith.constant dense<0.000000e+00> : vector<128xf32>
    %122 = vector.multi_reduction <add>, %121, %cst_80 [0] : vector<16x128xf32> to vector<128xf32>
    %123 = vector.shape_cast %122 : vector<128xf32> to vector<1x128xf32>
    %124 = arith.mulf %120, %8 : vector<16x128xf32>
    %cst_81 = arith.constant dense<0.000000e+00> : vector<128xf32>
    %125 = vector.multi_reduction <add>, %124, %cst_81 [0] : vector<16x128xf32> to vector<128xf32>
    %126 = vector.shape_cast %125 : vector<128xf32> to vector<1x128xf32>
    %127 = arith.mulf %123, %18 : vector<1x128xf32>
    %cst_82 = arith.constant 9.99999996E-13 : f32
    %128 = vector.broadcast %cst_82 : f32 to vector<1x128xf32>
    %129 = arith.maximumf %127, %128 : vector<1x128xf32>
    %130 = math.rsqrt %129 : vector<1x128xf32>
    %131 = arith.mulf %126, %130 : vector<1x128xf32>
    %132 = arith.mulf %120, %27 : vector<16x128xf32>
    %cst_83 = arith.constant dense<0.000000e+00> : vector<128xf32>
    %133 = vector.multi_reduction <add>, %132, %cst_83 [0] : vector<16x128xf32> to vector<128xf32>
    %134 = vector.shape_cast %133 : vector<128xf32> to vector<1x128xf32>
    %135 = arith.mulf %123, %37 : vector<1x128xf32>
    %cst_84 = arith.constant 9.99999996E-13 : f32
    %136 = vector.broadcast %cst_84 : f32 to vector<1x128xf32>
    %137 = arith.maximumf %135, %136 : vector<1x128xf32>
    %138 = math.rsqrt %137 : vector<1x128xf32>
    %139 = arith.mulf %134, %138 : vector<1x128xf32>
    %140 = arith.mulf %120, %47 : vector<16x128xf32>
    %cst_85 = arith.constant dense<0.000000e+00> : vector<128xf32>
    %141 = vector.multi_reduction <add>, %140, %cst_85 [0] : vector<16x128xf32> to vector<128xf32>
    %142 = vector.shape_cast %141 : vector<128xf32> to vector<1x128xf32>
    %143 = arith.mulf %123, %57 : vector<1x128xf32>
    %cst_86 = arith.constant 9.99999996E-13 : f32
    %144 = vector.broadcast %cst_86 : f32 to vector<1x128xf32>
    %145 = arith.maximumf %143, %144 : vector<1x128xf32>
    %146 = math.rsqrt %145 : vector<1x128xf32>
    %147 = arith.mulf %142, %146 : vector<1x128xf32>
    %148 = arith.maximumf %131, %139 : vector<1x128xf32>
    %149 = arith.maximumf %148, %147 : vector<1x128xf32>
    %150 = arith.subf %131, %149 : vector<1x128xf32>
    %151 = math.exp %150 : vector<1x128xf32>
    %152 = arith.subf %139, %149 : vector<1x128xf32>
    %153 = math.exp %152 : vector<1x128xf32>
    %154 = arith.subf %147, %149 : vector<1x128xf32>
    %155 = math.exp %154 : vector<1x128xf32>
    %156 = arith.addf %151, %153 : vector<1x128xf32>
    %157 = arith.addf %156, %155 : vector<1x128xf32>
    %158 = arith.divf %151, %157 : vector<1x128xf32>
    %159 = vector.broadcast %158 : vector<1x128xf32> to vector<16x128xf32>
    %160 = arith.mulf %159, %58 : vector<16x128xf32>
    %161 = arith.addf %113, %160 : vector<16x128xf32>
    %c1_87 = arith.constant 1 : index
    %c0_88 = arith.constant 0 : index
    %c0_89 = arith.constant 0 : index
    %162 = vector.load %arg8[%c1_87, %c0_88, %c0_89] : memref<3x16x128xf32, #tpu.memory_space<vmem>>, vector<1x16x128xf32>
    %163 = vector.shape_cast %162 : vector<1x16x128xf32> to vector<16x128xf32>
    %164 = vector.shape_cast %161 : vector<16x128xf32> to vector<1x16x128xf32>
    tpu.vector_store %arg8[%c1_87, %c0_88, %c0_89], %164 {strides = array<i32>} : memref<3x16x128xf32, #tpu.memory_space<vmem>>, vector<1x16x128xf32>,
    %c2_90 = arith.constant 2 : index
    %c0_91 = arith.constant 0 : index
    %c0_92 = arith.constant 0 : index
    %165 = vector.load %arg1[%c2_90, %c0_91, %c0_92] : memref<3x16x128xf32, #tpu.memory_space<vmem>>, vector<1x16x128xf32>
    %166 = vector.shape_cast %165 : vector<1x16x128xf32> to vector<16x128xf32>
    %c2_93 = arith.constant 2 : index
    %c0_94 = arith.constant 0 : index
    %c0_95 = arith.constant 0 : index
    %167 = vector.load %arg2[%c2_93, %c0_94, %c0_95] : memref<3x16x16xf32, #tpu.memory_space<vmem>>, vector<1x16x16xf32>
    %168 = vector.shape_cast %167 : vector<1x16x16xf32> to vector<16x16xf32>
    %cst_96 = arith.constant dense<0.000000e+00> : vector<16x128xf32>
    %169 = tpu.matmul %168, %166, %cst_96 {dimension_numbers = #tpu.dot_dimension_numbers<[1], [0], [0], [1], [0, 0, 1, 1], [], []>} : vector<16x16xf32>, vector<16x128xf32>, vector<16x128xf32> -> vector<16x128xf32>
    %c2_97 = arith.constant 2 : index
    %c0_98 = arith.constant 0 : index
    %c0_99 = arith.constant 0 : index
    %170 = vector.load %arg3[%c2_97, %c0_98, %c0_99] : memref<3x16x1xf32, #tpu.memory_space<vmem>>, vector<1x16x1xf32>
    %171 = vector.shape_cast %170 : vector<1x16x1xf32> to vector<16x1xf32>
    %172 = vector.broadcast %171 : vector<16x1xf32> to vector<16x128xf32>
    %173 = arith.addf %169, %172 : vector<16x128xf32>
    %174 = arith.mulf %173, %173 : vector<16x128xf32>
    %cst_100 = arith.constant dense<0.000000e+00> : vector<128xf32>
    %175 = vector.multi_reduction <add>, %174, %cst_100 [0] : vector<16x128xf32> to vector<128xf32>
    %176 = vector.shape_cast %175 : vector<128xf32> to vector<1x128xf32>
    %177 = arith.mulf %173, %8 : vector<16x128xf32>
    %cst_101 = arith.constant dense<0.000000e+00> : vector<128xf32>
    %178 = vector.multi_reduction <add>, %177, %cst_101 [0] : vector<16x128xf32> to vector<128xf32>
    %179 = vector.shape_cast %178 : vector<128xf32> to vector<1x128xf32>
    %180 = arith.mulf %176, %18 : vector<1x128xf32>
    %cst_102 = arith.constant 9.99999996E-13 : f32
    %181 = vector.broadcast %cst_102 : f32 to vector<1x128xf32>
    %182 = arith.maximumf %180, %181 : vector<1x128xf32>
    %183 = math.rsqrt %182 : vector<1x128xf32>
    %184 = arith.mulf %179, %183 : vector<1x128xf32>
    %185 = arith.mulf %173, %27 : vector<16x128xf32>
    %cst_103 = arith.constant dense<0.000000e+00> : vector<128xf32>
    %186 = vector.multi_reduction <add>, %185, %cst_103 [0] : vector<16x128xf32> to vector<128xf32>
    %187 = vector.shape_cast %186 : vector<128xf32> to vector<1x128xf32>
    %188 = arith.mulf %176, %37 : vector<1x128xf32>
    %cst_104 = arith.constant 9.99999996E-13 : f32
    %189 = vector.broadcast %cst_104 : f32 to vector<1x128xf32>
    %190 = arith.maximumf %188, %189 : vector<1x128xf32>
    %191 = math.rsqrt %190 : vector<1x128xf32>
    %192 = arith.mulf %187, %191 : vector<1x128xf32>
    %193 = arith.mulf %173, %47 : vector<16x128xf32>
    %cst_105 = arith.constant dense<0.000000e+00> : vector<128xf32>
    %194 = vector.multi_reduction <add>, %193, %cst_105 [0] : vector<16x128xf32> to vector<128xf32>
    %195 = vector.shape_cast %194 : vector<128xf32> to vector<1x128xf32>
    %196 = arith.mulf %176, %57 : vector<1x128xf32>
    %cst_106 = arith.constant 9.99999996E-13 : f32
    %197 = vector.broadcast %cst_106 : f32 to vector<1x128xf32>
    %198 = arith.maximumf %196, %197 : vector<1x128xf32>
    %199 = math.rsqrt %198 : vector<1x128xf32>
    %200 = arith.mulf %195, %199 : vector<1x128xf32>
    %201 = arith.maximumf %184, %192 : vector<1x128xf32>
    %202 = arith.maximumf %201, %200 : vector<1x128xf32>
    %203 = arith.subf %184, %202 : vector<1x128xf32>
    %204 = math.exp %203 : vector<1x128xf32>
    %205 = arith.subf %192, %202 : vector<1x128xf32>
    %206 = math.exp %205 : vector<1x128xf32>
    %207 = arith.subf %200, %202 : vector<1x128xf32>
    %208 = math.exp %207 : vector<1x128xf32>
    %209 = arith.addf %204, %206 : vector<1x128xf32>
    %210 = arith.addf %209, %208 : vector<1x128xf32>
    %211 = arith.divf %204, %210 : vector<1x128xf32>
    %212 = vector.broadcast %211 : vector<1x128xf32> to vector<16x128xf32>
    %213 = arith.mulf %212, %58 : vector<16x128xf32>
    %214 = arith.addf %166, %213 : vector<16x128xf32>
    %c2_107 = arith.constant 2 : index
    %c0_108 = arith.constant 0 : index
    %c0_109 = arith.constant 0 : index
    %215 = vector.load %arg8[%c2_107, %c0_108, %c0_109] : memref<3x16x128xf32, #tpu.memory_space<vmem>>, vector<1x16x128xf32>
    %216 = vector.shape_cast %215 : vector<1x16x128xf32> to vector<16x128xf32>
    %217 = vector.shape_cast %214 : vector<16x128xf32> to vector<1x16x128xf32>
    tpu.vector_store %arg8[%c2_107, %c0_108, %c0_109], %217 {strides = array<i32>} : memref<3x16x128xf32, #tpu.memory_space<vmem>>, vector<1x16x128xf32>,
    return
  }
  func.func @transform_0(%arg0: i32) -> (i32, i32, i32) {
    %c0_i32 = arith.constant 0 : i32
    %c0_i32_0 = arith.constant 0 : i32
    %c0_i32_1 = arith.constant 0 : i32
    return %c0_i32, %c0_i32_0, %arg0 : i32, i32, i32
  }
  func.func @transform_1(%arg0: i32) -> (i32, i32, i32) {
    %c0_i32 = arith.constant 0 : i32
    %c0_i32_0 = arith.constant 0 : i32
    %c0_i32_1 = arith.constant 0 : i32
    %c0_i32_2 = arith.constant 0 : i32
    return %c0_i32, %c0_i32_0, %c0_i32_1 : i32, i32, i32
  }
  func.func @transform_2(%arg0: i32) -> (i32, i32, i32) {
    %c0_i32 = arith.constant 0 : i32
    %c0_i32_0 = arith.constant 0 : i32
    %c0_i32_1 = arith.constant 0 : i32
    %c0_i32_2 = arith.constant 0 : i32
    return %c0_i32, %c0_i32_0, %c0_i32_1 : i32, i32, i32
  }
  func.func @transform_3(%arg0: i32) -> (i32, i32, i32) {
    %c0_i32 = arith.constant 0 : i32
    %c0_i32_0 = arith.constant 0 : i32
    %c0_i32_1 = arith.constant 0 : i32
    %c0_i32_2 = arith.constant 0 : i32
    return %c0_i32, %c0_i32_0, %c0_i32_1 : i32, i32, i32
  }
  func.func @transform_4(%arg0: i32) -> (i32, i32, i32) {
    %c0_i32 = arith.constant 0 : i32
    %c0_i32_0 = arith.constant 0 : i32
    %c0_i32_1 = arith.constant 0 : i32
    %c0_i32_2 = arith.constant 0 : i32
    return %c0_i32, %c0_i32_0, %c0_i32_1 : i32, i32, i32
  }
  func.func @transform_5(%arg0: i32) -> (i32, i32, i32) {
    %c0_i32 = arith.constant 0 : i32
    %c0_i32_0 = arith.constant 0 : i32
    %c0_i32_1 = arith.constant 0 : i32
    %c0_i32_2 = arith.constant 0 : i32
    return %c0_i32, %c0_i32_0, %c0_i32_1 : i32, i32, i32
  }
  func.func @transform_6(%arg0: i32) -> (i32, i32, i32) {
    %c0_i32 = arith.constant 0 : i32
    %c0_i32_0 = arith.constant 0 : i32
    %c0_i32_1 = arith.constant 0 : i32
    %c0_i32_2 = arith.constant 0 : i32
    return %c0_i32, %c0_i32_0, %c0_i32_1 : i32, i32, i32
  }
  func.func @transform_7(%arg0: i32) -> (i32, i32, i32) {
    %c0_i32 = arith.constant 0 : i32
    %c0_i32_0 = arith.constant 0 : i32
    %c0_i32_1 = arith.constant 0 : i32
    return %c0_i32, %c0_i32_0, %arg0 : i32, i32, i32
  }
}

</mosaic_0001>

<llo_original>
// kernel: multimodal_attention.1
$region0: #{multimodal_attention.1}
  #allocation0 [shape = 'u32[]', space=smem, size = 0x4, offset = 0x4, fixed_abs, tag = 'smem constant byte address 0x4 - core index']
  #allocation1 [shape = 'u32[72,128]{1,0:T(1,128)}', space=vmem, size = 0x9000, scoped, tag = 'internal scratch']
  %s0 = inlined_call_operand.vmem [shape: f32[3,16,128], index: 0, kind: input, shape index: {}]
  %s1 = inlined_call_operand.vmem [shape: f32[3,16,16], index: 1, kind: input, shape index: {}]
  %s2 = inlined_call_operand.vmem [shape: f32[3,16,1], index: 2, kind: input, shape index: {}]
  %s3 = inlined_call_operand.vmem [shape: f32[3,16,16], index: 3, kind: input, shape index: {}]
  %s4 = inlined_call_operand.vmem [shape: f32[3,16,1], index: 4, kind: input, shape index: {}]
  %s5 = inlined_call_operand.vmem [shape: f32[3,16,16], index: 5, kind: input, shape index: {}]
  %s6 = inlined_call_operand.vmem [shape: f32[3,16,1], index: 6, kind: input, shape index: {}]
  %s7 = inlined_call_operand.vmem [shape: f32[3,16,128], index: 7, kind: output, shape index: {}]
  %s8 = sld [smem:[#allocation0]]
  $region38: #{multimodal_attention.1} parent=0
    _
  %s10 = ssub.s32 1, %s8
  %s11 = scalar_select 0, %s10, %s8
  // Predicated region
  $region2: #{multimodal_attention.1} parent=0 // pred_check
    _
  $region3: #{multimodal_attention.1} parent=0 // pred_check_branch
    %13 = sbr.rel (0) target = $region5
  $region4: #{multimodal_attention.1} parent=0 // pred_region
    _
  $region5: #{multimodal_attention.1} parent=0 // pred_fallthru
    _
  // Predicated region
  $region6: #{multimodal_attention.1} parent=0 // pred_check
    _
  $region7: #{multimodal_attention.1} parent=0 // pred_check_branch
    %15 = sbr.rel (0) target = $region9
  $region8: #{multimodal_attention.1} parent=0 // pred_region
    _
  $region9: #{multimodal_attention.1} parent=0 // pred_fallthru
    _
  // Predicated region
  $region10: #{multimodal_attention.1} parent=0 // pred_check
    _
  $region11: #{multimodal_attention.1} parent=0 // pred_check_branch
    %17 = sbr.rel (0) target = $region13
  $region12: #{multimodal_attention.1} parent=0 // pred_region
    _
  $region13: #{multimodal_attention.1} parent=0 // pred_fallthru
    _
  // Predicated region
  $region14: #{multimodal_attention.1} parent=0 // pred_check
    _
  $region15: #{multimodal_attention.1} parent=0 // pred_check_branch
    %19 = sbr.rel (0) target = $region17
  $region16: #{multimodal_attention.1} parent=0 // pred_region
    _
  $region17: #{multimodal_attention.1} parent=0 // pred_fallthru
    _
  // Predicated region
  $region18: #{multimodal_attention.1} parent=0 // pred_check
    _
  $region19: #{multimodal_attention.1} parent=0 // pred_check_branch
    %21 = sbr.rel (0) target = $region21
  $region20: #{multimodal_attention.1} parent=0 // pred_region
    _
  $region21: #{multimodal_attention.1} parent=0 // pred_fallthru
    _
  // Predicated region
  $region22: #{multimodal_attention.1} parent=0 // pred_check
    _
  $region23: #{multimodal_attention.1} parent=0 // pred_check_branch
    %23 = sbr.rel (0) target = $region25
  $region24: #{multimodal_attention.1} parent=0 // pred_region
    _
  $region25: #{multimodal_attention.1} parent=0 // pred_fallthru
    _
  // Predicated region
  $region26: #{multimodal_attention.1} parent=0 // pred_check
    _
  $region27: #{multimodal_attention.1} parent=0 // pred_check_branch
    %25 = sbr.rel (0) target = $region29
  $region28: #{multimodal_attention.1} parent=0 // pred_region
    _
  $region29: #{multimodal_attention.1} parent=0 // pred_fallthru
    _
  %v26 = vld [vmem:[%s0] sm:$0xff]
  %v27 = vld [vmem:[%s0 + $0x8] sm:$0xff]
  %v28 = vld [vmem:[%s3] sm:$0xff]
  %v29 = vld [vmem:[%s3 + $0x8] sm:$0xff]
  %v30 = vld [vmem:[%s4] sm:$0xff]
  %v31 = vld [vmem:[%s4 + $0x8] sm:$0xff]
  %33 = vset.pattern.permute.xlu0 0
  %34 = vperm.xlu0 %33, %v30
  %v35 = vpop.permute.xlu0 %34
  %38 = vset.pattern.permute.xlu0 0
  %39 = vperm.xlu0 %38, %v31
  %v40 = vpop.permute.xlu0 %39
  %vm42 = vcmask 130048
  %v44 = vsel %vm42, %v28, 0
  %v47 = vsel %vm42, %v29, 0
  %49 = vmatpush.msra.mxu0 0.0
  %50 = vmatpush.msra.mxu0 0.0
  %51 = vmatpush.msra.mxu0 0.0
  %52 = vmatpush.msra.mxu0 0.0
  %53 = vmatpush.msra.mxu0 0.0
  %54 = vmatpush.msra.mxu0 0.0
  %55 = vmatpush.msra.mxu0 0.0
  %56 = vmatpush.msra.mxu0 0.0
  %57 = vmatpush.msra.mxu0 0.0
  %58 = vmatpush.msra.mxu0 0.0
  %59 = vmatpush.msra.mxu0 0.0
  %60 = vmatpush.msra.mxu0 0.0
  %61 = vmatpush.msra.mxu0 0.0
  %62 = vmatpush.msra.mxu0 0.0
  %63 = vmatpush.msra.mxu0 %v27
  %64 = vmatpush.msra.mxu0 %v26
  %65 = vmatmul.f32.gmra.mxu0 %v44
  %v66 = vpop.f32.mrf.mxu0
  %v67 = vadd.f32 %v35, %v66
  %68 = vmatmul.f32.gmra.mxu0 %v47
  %v69 = vpop.f32.mrf.mxu0
  %v70 = vadd.f32 %v40, %v69
  %71 = vdwg.mxu0
  %v72 = vld [vmem:[%s5] sm:$0xff]
  %v73 = vld [vmem:[%s5 + $0x8] sm:$0xff]
  %v74 = vld [vmem:[%s6] sm:$0xff]
  %v75 = vld [vmem:[%s6 + $0x8] sm:$0xff]
  %77 = vset.pattern.permute.xlu0 0
  %78 = vperm.xlu0 %77, %v74
  %v79 = vpop.permute.xlu0 %78
  %82 = vset.pattern.permute.xlu0 0
  %83 = vperm.xlu0 %82, %v75
  %v84 = vpop.permute.xlu0 %83
  %v87 = vsel %vm42, %v72, 0
  %v90 = vsel %vm42, %v73, 0
  %92 = vmatpush.msra.mxu0 0.0
  %93 = vmatpush.msra.mxu0 0.0
  %94 = vmatpush.msra.mxu0 0.0
  %95 = vmatpush.msra.mxu0 0.0
  %96 = vmatpush.msra.mxu0 0.0
  %97 = vmatpush.msra.mxu0 0.0
  %98 = vmatpush.msra.mxu0 0.0
  %99 = vmatpush.msra.mxu0 0.0
  %100 = vmatpush.msra.mxu0 0.0
  %101 = vmatpush.msra.mxu0 0.0
  %102 = vmatpush.msra.mxu0 0.0
  %103 = vmatpush.msra.mxu0 0.0
  %104 = vmatpush.msra.mxu0 0.0
  %105 = vmatpush.msra.mxu0 0.0
  %106 = vmatpush.msra.mxu0 %v27
  %107 = vmatpush.msra.mxu0 %v26
  %108 = vmatmul.f32.gmra.mxu0 %v87
  %v109 = vpop.f32.mrf.mxu0
  %v110 = vadd.f32 %v79, %v109
  %111 = vmatmul.f32.gmra.mxu0 %v90
  %v112 = vpop.f32.mrf.mxu0
  %v113 = vadd.f32 %v84, %v112
  %114 = vdwg.mxu0
  %v115 = vmul.f32 %v67, %v67
  %v116 = vmul.f32 %v70, %v70
  %v117 = vadd.f32 %v115, %v116
  %v118 = vrot.slane %v117, 4
  %v119 = vadd.f32 %v117, %v118
  %v120 = vrot.slane %v119, 2
  %v121 = vadd.f32 %v119, %v120
  %v122 = vrot.slane %v121, 1
  %v123 = vadd.f32 %v121, %v122
  %s124 = scalar_lea.vmem %s0, 16
  %v125 = vld [vmem:[%s124] sm:$0xff]
  %v126 = vld [vmem:[%s124 + $0x8] sm:$0xff]
  %s127 = scalar_lea.vmem %s3, 16
  %v128 = vld [vmem:[%s127] sm:$0xff]
  %v129 = vld [vmem:[%s127 + $0x8] sm:$0xff]
  %s130 = scalar_lea.vmem %s4, 16
  %v131 = vld [vmem:[%s130] sm:$0xff]
  %v132 = vld [vmem:[%s130 + $0x8] sm:$0xff]
  %134 = vset.pattern.permute.xlu0 0
  %135 = vperm.xlu0 %134, %v131
  %v136 = vpop.permute.xlu0 %135
  %139 = vset.pattern.permute.xlu0 0
  %140 = vperm.xlu0 %139, %v132
  %v141 = vpop.permute.xlu0 %140
  %v144 = vsel %vm42, %v128, 0
  %v147 = vsel %vm42, %v129, 0
  %149 = vmatpush.msra.mxu0 0.0
  %150 = vmatpush.msra.mxu0 0.0
  %151 = vmatpush.msra.mxu0 0.0
  %152 = vmatpush.msra.mxu0 0.0
  %153 = vmatpush.msra.mxu0 0.0
  %154 = vmatpush.msra.mxu0 0.0
  %155 = vmatpush.msra.mxu0 0.0
  %156 = vmatpush.msra.mxu0 0.0
  %157 = vmatpush.msra.mxu0 0.0
  %158 = vmatpush.msra.mxu0 0.0
  %159 = vmatpush.msra.mxu0 0.0
  %160 = vmatpush.msra.mxu0 0.0
  %161 = vmatpush.msra.mxu0 0.0
  %162 = vmatpush.msra.mxu0 0.0
  %163 = vmatpush.msra.mxu0 %v126
  %164 = vmatpush.msra.mxu0 %v125
  %165 = vmatmul.f32.gmra.mxu0 %v144
  %v166 = vpop.f32.mrf.mxu0
  %v167 = vadd.f32 %v136, %v166
  %168 = vmatmul.f32.gmra.mxu0 %v147
  %v169 = vpop.f32.mrf.mxu0
  %v170 = vadd.f32 %v141, %v169
  %171 = vdwg.mxu0
  %s172 = scalar_lea.vmem %s5, 16
  %v173 = vld [vmem:[%s172] sm:$0xff]
  %v174 = vld [vmem:[%s172 + $0x8] sm:$0xff]
  %s175 = scalar_lea.vmem %s6, 16
  %v176 = vld [vmem:[%s175] sm:$0xff]
  %v177 = vld [vmem:[%s175 + $0x8] sm:$0xff]
  %179 = vset.pattern.permute.xlu0 0
  %180 = vperm.xlu0 %179, %v176
  %v181 = vpop.permute.xlu0 %180
  %184 = vset.pattern.permute.xlu0 0
  %185 = vperm.xlu0 %184, %v177
  %v186 = vpop.permute.xlu0 %185
  %v189 = vsel %vm42, %v173, 0
  %v192 = vsel %vm42, %v174, 0
  %194 = vmatpush.msra.mxu0 0.0
  %195 = vmatpush.msra.mxu0 0.0
  %196 = vmatpush.msra.mxu0 0.0
  %197 = vmatpush.msra.mxu0 0.0
  %198 = vmatpush.msra.mxu0 0.0
  %199 = vmatpush.msra.mxu0 0.0
  %200 = vmatpush.msra.mxu0 0.0
  %201 = vmatpush.msra.mxu0 0.0
  %202 = vmatpush.msra.mxu0 0.0
  %203 = vmatpush.msra.mxu0 0.0
  %204 = vmatpush.msra.mxu0 0.0
  %205 = vmatpush.msra.mxu0 0.0
  %206 = vmatpush.msra.mxu0 0.0
  %207 = vmatpush.msra.mxu0 0.0
  %208 = vmatpush.msra.mxu0 %v126
  %209 = vmatpush.msra.mxu0 %v125
  %210 = vmatmul.f32.gmra.mxu0 %v189
  %v211 = vpop.f32.mrf.mxu0
  %v212 = vadd.f32 %v181, %v211
  %213 = vmatmul.f32.gmra.mxu0 %v192
  %v214 = vpop.f32.mrf.mxu0
  %v215 = vadd.f32 %v186, %v214
  %216 = vdwg.mxu0
  %v217 = vmul.f32 %v167, %v167
  %v218 = vmul.f32 %v170, %v170
  %v219 = vadd.f32 %v217, %v218
  %v220 = vrot.slane %v219, 4
  %v221 = vadd.f32 %v219, %v220
  %v222 = vrot.slane %v221, 2
  %v223 = vadd.f32 %v221, %v222
  %v224 = vrot.slane %v223, 1
  %v225 = vadd.f32 %v223, %v224
  %v226 = vadd.f32 %v110, %v212
  %v227 = vadd.f32 %v113, %v215
  %s228 = scalar_lea.vmem %s0, 32
  %v229 = vld [vmem:[%s228] sm:$0xff]
  %v230 = vld [vmem:[%s228 + $0x8] sm:$0xff]
  %s231 = scalar_lea.vmem %s3, 32
  %v232 = vld [vmem:[%s231] sm:$0xff]
  %v233 = vld [vmem:[%s231 + $0x8] sm:$0xff]
  %s234 = scalar_lea.vmem %s4, 32
  %v235 = vld [vmem:[%s234] sm:$0xff]
  %v236 = vld [vmem:[%s234 + $0x8] sm:$0xff]
  %238 = vset.pattern.permute.xlu0 0
  %239 = vperm.xlu0 %238, %v235
  %v240 = vpop.permute.xlu0 %239
  %243 = vset.pattern.permute.xlu0 0
  %244 = vperm.xlu0 %243, %v236
  %v245 = vpop.permute.xlu0 %244
  %v248 = vsel %vm42, %v232, 0
  %v251 = vsel %vm42, %v233, 0
  %253 = vmatpush.msra.mxu0 0.0
  %254 = vmatpush.msra.mxu0 0.0
  %255 = vmatpush.msra.mxu0 0.0
  %256 = vmatpush.msra.mxu0 0.0
  %257 = vmatpush.msra.mxu0 0.0
  %258 = vmatpush.msra.mxu0 0.0
  %259 = vmatpush.msra.mxu0 0.0
  %260 = vmatpush.msra.mxu0 0.0
  %261 = vmatpush.msra.mxu0 0.0
  %262 = vmatpush.msra.mxu0 0.0
  %263 = vmatpush.msra.mxu0 0.0
  %264 = vmatpush.msra.mxu0 0.0
  %265 = vmatpush.msra.mxu0 0.0
  %266 = vmatpush.msra.mxu0 0.0
  %267 = vmatpush.msra.mxu0 %v230
  %268 = vmatpush.msra.mxu0 %v229
  %269 = vmatmul.f32.gmra.mxu0 %v248
  %v270 = vpop.f32.mrf.mxu0
  %v271 = vadd.f32 %v240, %v270
  %272 = vmatmul.f32.gmra.mxu0 %v251
  %v273 = vpop.f32.mrf.mxu0
  %v274 = vadd.f32 %v245, %v273
  %275 = vdwg.mxu0
  %s276 = scalar_lea.vmem %s5, 32
  %v277 = vld [vmem:[%s276] sm:$0xff]
  %v278 = vld [vmem:[%s276 + $0x8] sm:$0xff]
  %s279 = scalar_lea.vmem %s6, 32
  %v280 = vld [vmem:[%s279] sm:$0xff]
  %v281 = vld [vmem:[%s279 + $0x8] sm:$0xff]
  %283 = vset.pattern.permute.xlu0 0
  %284 = vperm.xlu0 %283, %v280
  %v285 = vpop.permute.xlu0 %284
  %288 = vset.pattern.permute.xlu0 0
  %289 = vperm.xlu0 %288, %v281
  %v290 = vpop.permute.xlu0 %289
  %v293 = vsel %vm42, %v277, 0
  %v296 = vsel %vm42, %v278, 0
  %298 = vmatpush.msra.mxu0 0.0
  %299 = vmatpush.msra.mxu0 0.0
  %300 = vmatpush.msra.mxu0 0.0
  %301 = vmatpush.msra.mxu0 0.0
  %302 = vmatpush.msra.mxu0 0.0
  %303 = vmatpush.msra.mxu0 0.0
  %304 = vmatpush.msra.mxu0 0.0
  %305 = vmatpush.msra.mxu0 0.0
  %306 = vmatpush.msra.mxu0 0.0
  %307 = vmatpush.msra.mxu0 0.0
  %308 = vmatpush.msra.mxu0 0.0
  %309 = vmatpush.msra.mxu0 0.0
  %310 = vmatpush.msra.mxu0 0.0
  %311 = vmatpush.msra.mxu0 0.0
  %312 = vmatpush.msra.mxu0 %v230
  %313 = vmatpush.msra.mxu0 %v229
  %314 = vmatmul.f32.gmra.mxu0 %v293
  %v315 = vpop.f32.mrf.mxu0
  %v316 = vadd.f32 %v285, %v315
  %317 = vmatmul.f32.gmra.mxu0 %v296
  %v318 = vpop.f32.mrf.mxu0
  %v319 = vadd.f32 %v290, %v318
  %320 = vdwg.mxu0
  %v321 = vmul.f32 %v271, %v271
  %v322 = vmul.f32 %v274, %v274
  %v323 = vadd.f32 %v321, %v322
  %v324 = vrot.slane %v323, 4
  %v325 = vadd.f32 %v323, %v324
  %v326 = vrot.slane %v325, 2
  %v327 = vadd.f32 %v325, %v326
  %v328 = vrot.slane %v327, 1
  %v329 = vadd.f32 %v327, %v328
  %v330 = vadd.f32 %v226, %v316
  %v331 = vadd.f32 %v227, %v319
  %v332 = vld [vmem:[%s1] sm:$0xff]
  %v333 = vld [vmem:[%s1 + $0x8] sm:$0xff]
  %v334 = vld [vmem:[%s2] sm:$0xff]
  %v335 = vld [vmem:[%s2 + $0x8] sm:$0xff]
  %337 = vset.pattern.permute.xlu0 0
  %338 = vperm.xlu0 %337, %v334
  %v339 = vpop.permute.xlu0 %338
  %342 = vset.pattern.permute.xlu0 0
  %343 = vperm.xlu0 %342, %v335
  %v344 = vpop.permute.xlu0 %343
  %v347 = vsel %vm42, %v332, 0
  %v350 = vsel %vm42, %v333, 0
  %352 = vmatpush.msra.mxu0 0.0
  %353 = vmatpush.msra.mxu0 0.0
  %354 = vmatpush.msra.mxu0 0.0
  %355 = vmatpush.msra.mxu0 0.0
  %356 = vmatpush.msra.mxu0 0.0
  %357 = vmatpush.msra.mxu0 0.0
  %358 = vmatpush.msra.mxu0 0.0
  %359 = vmatpush.msra.mxu0 0.0
  %360 = vmatpush.msra.mxu0 0.0
  %361 = vmatpush.msra.mxu0 0.0
  %362 = vmatpush.msra.mxu0 0.0
  %363 = vmatpush.msra.mxu0 0.0
  %364 = vmatpush.msra.mxu0 0.0
  %365 = vmatpush.msra.mxu0 0.0
  %366 = vmatpush.msra.mxu0 %v27
  %367 = vmatpush.msra.mxu0 %v26
  %368 = vmatmul.f32.gmra.mxu0 %v347
  %v369 = vpop.f32.mrf.mxu0
  %v370 = vadd.f32 %v339, %v369
  %371 = vmatmul.f32.gmra.mxu0 %v350
  %v372 = vpop.f32.mrf.mxu0
  %v373 = vadd.f32 %v344, %v372
  %374 = vdwg.mxu0
  %v375 = vmul.f32 %v370, %v370
  %v376 = vmul.f32 %v373, %v373
  %v377 = vadd.f32 %v375, %v376
  %v378 = vrot.slane %v377, 4
  %v379 = vadd.f32 %v377, %v378
  %v380 = vrot.slane %v379, 2
  %v381 = vadd.f32 %v379, %v380
  %v382 = vrot.slane %v381, 1
  %v383 = vadd.f32 %v381, %v382
  %v384 = vmul.f32 %v370, %v67
  %v385 = vmul.f32 %v373, %v70
  %v386 = vadd.f32 %v384, %v385
  %v387 = vrot.slane %v386, 4
  %v388 = vadd.f32 %v386, %v387
  %v389 = vrot.slane %v388, 2
  %v390 = vadd.f32 %v388, %v389
  %v391 = vrot.slane %v390, 1
  %v392 = vadd.f32 %v390, %v391
  %v393 = vmul.f32 %v383, %v123
  %v394 = vmax.f32 %v393, 1e-12
  %v395 = vrsqrt.pop %v394
  %v396 = vmul.f32 %v395, %v394
  %v397 = vmul.f32 %v396, %v395
  %v398 = vmul.f32 0.5, %v397
  %v399 = vsub.f32 1.5, %v398
  %v400 = vmul.f32 %v395, %v399
  %vm401 = vweird.f32 %v394
  %vm402 = vweird.f32 %v395
  %vm403 = vmor %vm401, %vm402
  %v404 = vsel %vm403, %v395, %v400
  %v405 = vmul.f32 %v392, %v404
  %v406 = vmul.f32 %v370, %v167
  %v407 = vmul.f32 %v373, %v170
  %v408 = vadd.f32 %v406, %v407
  %v409 = vrot.slane %v408, 4
  %v410 = vadd.f32 %v408, %v409
  %v411 = vrot.slane %v410, 2
  %v412 = vadd.f32 %v410, %v411
  %v413 = vrot.slane %v412, 1
  %v414 = vadd.f32 %v412, %v413
  %v415 = vmul.f32 %v383, %v225
  %v416 = vmax.f32 %v415, 1e-12
  %v417 = vrsqrt.pop %v416
  %v418 = vmul.f32 %v417, %v416
  %v419 = vmul.f32 %v418, %v417
  %v420 = vmul.f32 0.5, %v419
  %v421 = vsub.f32 1.5, %v420
  %v422 = vmul.f32 %v417, %v421
  %vm423 = vweird.f32 %v416
  %vm424 = vweird.f32 %v417
  %vm425 = vmor %vm423, %vm424
  %v426 = vsel %vm425, %v417, %v422
  %v427 = vmul.f32 %v414, %v426
  %v428 = vmul.f32 %v370, %v271
  %v429 = vmul.f32 %v373, %v274
  %v430 = vadd.f32 %v428, %v429
  %v431 = vrot.slane %v430, 4
  %v432 = vadd.f32 %v430, %v431
  %v433 = vrot.slane %v432, 2
  %v434 = vadd.f32 %v432, %v433
  %v435 = vrot.slane %v434, 1
  %v436 = vadd.f32 %v434, %v435
  %v437 = vmul.f32 %v383, %v329
  %v438 = vmax.f32 %v437, 1e-12
  %v439 = vrsqrt.pop %v438
  %v440 = vmul.f32 %v439, %v438
  %v441 = vmul.f32 %v440, %v439
  %v442 = vmul.f32 0.5, %v441
  %v443 = vsub.f32 1.5, %v442
  %v444 = vmul.f32 %v439, %v443
  %vm445 = vweird.f32 %v438
  %vm446 = vweird.f32 %v439
  %vm447 = vmor %vm445, %vm446
  %v448 = vsel %vm447, %v439, %v444
  %v449 = vmul.f32 %v436, %v448
  %v450 = vmax.f32 %v405, %v427
  %v451 = vmax.f32 %v450, %v449
  %v452 = vsub.f32 %v405, %v451
  %v453 = vmul.f32 %v452, 1.442695
  %v454 = vpow.pop %v453
  %v455 = vsub.f32 %v427, %v451
  %v456 = vmul.f32 %v455, 1.442695
  %v457 = vpow.pop %v456
  %v458 = vsub.f32 %v449, %v451
  %v459 = vmul.f32 %v458, 1.442695
  %v460 = vpow.pop %v459
  %v461 = vadd.f32 %v454, %v457
  %v462 = vadd.f32 %v461, %v460
  %v463 = vrcp.pop %v462
  %v464 = vmul.f32 %v462, %v463
  %v465 = vsub.f32 1.0, %v464
  %v466 = vmul.f32 %v463, %v465
  %v467 = vadd.f32 %v463, %v466
  %vm468 = vweird.f32 %v462
  %vm469 = vweird.f32 %v463
  %vm470 = vmor %vm468, %vm469
  %v471 = vsel %vm470, %v463, %v467
  %v472 = vand.u32 2147483647, %v462
  %vm473 = vcmp.eq.f32.partialorder %v472, 8.507059e+37
  %v474 = vand.u32 %v462, 2147483648
  %v475 = vor.u32 1.1754944e-38, %v474
  %v476 = vsel %vm473, %v475, %v471
  %v477 = vmul.f32 %v454, %v476
  %v478 = vmul.f32 %v477, %v330
  %v479 = vmul.f32 %v477, %v331
  %v480 = vadd.f32 %v26, %v478
  %v481 = vadd.f32 %v27, %v479
  %482 = vst [vmem:[%s7] sm:$0xff] %v480
  %483 = vst [vmem:[%s7 + $0x8] sm:$0xff] %v481
  %v484 = vld [vmem:[%s124] sm:$0xff]
  %v485 = vld [vmem:[%s124 + $0x8] sm:$0xff]
  %s486 = scalar_lea.vmem %s1, 16
  %v487 = vld [vmem:[%s486] sm:$0xff]
  %v488 = vld [vmem:[%s486 + $0x8] sm:$0xff]
  %s489 = scalar_lea.vmem %s2, 16
  %v490 = vld [vmem:[%s489] sm:$0xff]
  %v491 = vld [vmem:[%s489 + $0x8] sm:$0xff]
  %493 = vset.pattern.permute.xlu0 0
  %494 = vperm.xlu0 %493, %v490
  %v495 = vpop.permute.xlu0 %494
  %498 = vset.pattern.permute.xlu0 0
  %499 = vperm.xlu0 %498, %v491
  %v500 = vpop.permute.xlu0 %499
  %v503 = vsel %vm42, %v487, 0
  %v506 = vsel %vm42, %v488, 0
  %508 = vmatpush.msra.mxu0 0.0
  %509 = vmatpush.msra.mxu0 0.0
  %510 = vmatpush.msra.mxu0 0.0
  %511 = vmatpush.msra.mxu0 0.0
  %512 = vmatpush.msra.mxu0 0.0
  %513 = vmatpush.msra.mxu0 0.0
  %514 = vmatpush.msra.mxu0 0.0
  %515 = vmatpush.msra.mxu0 0.0
  %516 = vmatpush.msra.mxu0 0.0
  %517 = vmatpush.msra.mxu0 0.0
  %518 = vmatpush.msra.mxu0 0.0
  %519 = vmatpush.msra.mxu0 0.0
  %520 = vmatpush.msra.mxu0 0.0
  %521 = vmatpush.msra.mxu0 0.0
  %522 = vmatpush.msra.mxu0 %v485
  %523 = vmatpush.msra.mxu0 %v484
  %524 = vmatmul.f32.gmra.mxu0 %v503
  %v525 = vpop.f32.mrf.mxu0
  %v526 = vadd.f32 %v495, %v525
  %527 = vmatmul.f32.gmra.mxu0 %v506
  %v528 = vpop.f32.mrf.mxu0
  %v529 = vadd.f32 %v500, %v528
  %530 = vdwg.mxu0
  %v531 = vmul.f32 %v526, %v526
  %v532 = vmul.f32 %v529, %v529
  %v533 = vadd.f32 %v531, %v532
  %v534 = vrot.slane %v533, 4
  %v535 = vadd.f32 %v533, %v534
  %v536 = vrot.slane %v535, 2
  %v537 = vadd.f32 %v535, %v536
  %v538 = vrot.slane %v537, 1
  %v539 = vadd.f32 %v537, %v538
  %v540 = vmul.f32 %v526, %v67
  %v541 = vmul.f32 %v529, %v70
  %v542 = vadd.f32 %v540, %v541
  %v543 = vrot.slane %v542, 4
  %v544 = vadd.f32 %v542, %v543
  %v545 = vrot.slane %v544, 2
  %v546 = vadd.f32 %v544, %v545
  %v547 = vrot.slane %v546, 1
  %v548 = vadd.f32 %v546, %v547
  %v549 = vmul.f32 %v539, %v123
  %v550 = vmax.f32 %v549, 1e-12
  %v551 = vrsqrt.pop %v550
  %v552 = vmul.f32 %v551, %v550
  %v553 = vmul.f32 %v552, %v551
  %v554 = vmul.f32 0.5, %v553
  %v555 = vsub.f32 1.5, %v554
  %v556 = vmul.f32 %v551, %v555
  %vm557 = vweird.f32 %v550
  %vm558 = vweird.f32 %v551
  %vm559 = vmor %vm557, %vm558
  %v560 = vsel %vm559, %v551, %v556
  %v561 = vmul.f32 %v548, %v560
  %v562 = vmul.f32 %v526, %v167
  %v563 = vmul.f32 %v529, %v170
  %v564 = vadd.f32 %v562, %v563
  %v565 = vrot.slane %v564, 4
  %v566 = vadd.f32 %v564, %v565
  %v567 = vrot.slane %v566, 2
  %v568 = vadd.f32 %v566, %v567
  %v569 = vrot.slane %v568, 1
  %v570 = vadd.f32 %v568, %v569
  %v571 = vmul.f32 %v539, %v225
  %v572 = vmax.f32 %v571, 1e-12
  %v573 = vrsqrt.pop %v572
  %v574 = vmul.f32 %v573, %v572
  %v575 = vmul.f32 %v574, %v573
  %v576 = vmul.f32 0.5, %v575
  %v577 = vsub.f32 1.5, %v576
  %v578 = vmul.f32 %v573, %v577
  %vm579 = vweird.f32 %v572
  %vm580 = vweird.f32 %v573
  %vm581 = vmor %vm579, %vm580
  %v582 = vsel %vm581, %v573, %v578
  %v583 = vmul.f32 %v570, %v582
  %v584 = vmul.f32 %v526, %v271
  %v585 = vmul.f32 %v529, %v274
  %v586 = vadd.f32 %v584, %v585
  %v587 = vrot.slane %v586, 4
  %v588 = vadd.f32 %v586, %v587
  %v589 = vrot.slane %v588, 2
  %v590 = vadd.f32 %v588, %v589
  %v591 = vrot.slane %v590, 1
  %v592 = vadd.f32 %v590, %v591
  %v593 = vmul.f32 %v539, %v329
  %v594 = vmax.f32 %v593, 1e-12
  %v595 = vrsqrt.pop %v594
  %v596 = vmul.f32 %v595, %v594
  %v597 = vmul.f32 %v596, %v595
  %v598 = vmul.f32 0.5, %v597
  %v599 = vsub.f32 1.5, %v598
  %v600 = vmul.f32 %v595, %v599
  %vm601 = vweird.f32 %v594
  %vm602 = vweird.f32 %v595
  %vm603 = vmor %vm601, %vm602
  %v604 = vsel %vm603, %v595, %v600
  %v605 = vmul.f32 %v592, %v604
  %v606 = vmax.f32 %v561, %v583
  %v607 = vmax.f32 %v606, %v605
  %v608 = vsub.f32 %v561, %v607
  %v609 = vmul.f32 %v608, 1.442695
  %v610 = vpow.pop %v609
  %v611 = vsub.f32 %v583, %v607
  %v612 = vmul.f32 %v611, 1.442695
  %v613 = vpow.pop %v612
  %v614 = vsub.f32 %v605, %v607
  %v615 = vmul.f32 %v614, 1.442695
  %v616 = vpow.pop %v615
  %v617 = vadd.f32 %v610, %v613
  %v618 = vadd.f32 %v617, %v616
  %v619 = vrcp.pop %v618
  %v620 = vmul.f32 %v618, %v619
  %v621 = vsub.f32 1.0, %v620
  %v622 = vmul.f32 %v619, %v621
  %v623 = vadd.f32 %v619, %v622
  %vm624 = vweird.f32 %v618
  %vm625 = vweird.f32 %v619
  %vm626 = vmor %vm624, %vm625
  %v627 = vsel %vm626, %v619, %v623
  %v628 = vand.u32 2147483647, %v618
  %vm629 = vcmp.eq.f32.partialorder %v628, 8.507059e+37
  %v630 = vand.u32 %v618, 2147483648
  %v631 = vor.u32 1.1754944e-38, %v630
  %v632 = vsel %vm629, %v631, %v627
  %v633 = vmul.f32 %v610, %v632
  %v634 = vmul.f32 %v633, %v330
  %v635 = vmul.f32 %v633, %v331
  %v636 = vadd.f32 %v484, %v634
  %v637 = vadd.f32 %v485, %v635
  %s638 = scalar_lea.vmem %s7, 16
  %639 = vst [vmem:[%s638] sm:$0xff] %v636
  %640 = vst [vmem:[%s638 + $0x8] sm:$0xff] %v637
  %v641 = vld [vmem:[%s228] sm:$0xff]
  %v642 = vld [vmem:[%s228 + $0x8] sm:$0xff]
  %s643 = scalar_lea.vmem %s1, 32
  %v644 = vld [vmem:[%s643] sm:$0xff]
  %v645 = vld [vmem:[%s643 + $0x8] sm:$0xff]
  %s646 = scalar_lea.vmem %s2, 32
  %v647 = vld [vmem:[%s646] sm:$0xff]
  %v648 = vld [vmem:[%s646 + $0x8] sm:$0xff]
  %650 = vset.pattern.permute.xlu0 0
  %651 = vperm.xlu0 %650, %v647
  %v652 = vpop.permute.xlu0 %651
  %655 = vset.pattern.permute.xlu0 0
  %656 = vperm.xlu0 %655, %v648
  %v657 = vpop.permute.xlu0 %656
  %v660 = vsel %vm42, %v644, 0
  %v663 = vsel %vm42, %v645, 0
  %665 = vmatpush.msra.mxu0 0.0
  %666 = vmatpush.msra.mxu0 0.0
  %667 = vmatpush.msra.mxu0 0.0
  %668 = vmatpush.msra.mxu0 0.0
  %669 = vmatpush.msra.mxu0 0.0
  %670 = vmatpush.msra.mxu0 0.0
  %671 = vmatpush.msra.mxu0 0.0
  %672 = vmatpush.msra.mxu0 0.0
  %673 = vmatpush.msra.mxu0 0.0
  %674 = vmatpush.msra.mxu0 0.0
  %675 = vmatpush.msra.mxu0 0.0
  %676 = vmatpush.msra.mxu0 0.0
  %677 = vmatpush.msra.mxu0 0.0
  %678 = vmatpush.msra.mxu0 0.0
  %679 = vmatpush.msra.mxu0 %v642
  %680 = vmatpush.msra.mxu0 %v641
  %681 = vmatmul.f32.gmra.mxu0 %v660
  %v682 = vpop.f32.mrf.mxu0
  %v683 = vadd.f32 %v652, %v682
  %684 = vmatmul.f32.gmra.mxu0 %v663
  %v685 = vpop.f32.mrf.mxu0
  %v686 = vadd.f32 %v657, %v685
  %687 = vdwg.mxu0
  %v688 = vmul.f32 %v683, %v683
  %v689 = vmul.f32 %v686, %v686
  %v690 = vadd.f32 %v688, %v689
  %v691 = vrot.slane %v690, 4
  %v692 = vadd.f32 %v690, %v691
  %v693 = vrot.slane %v692, 2
  %v694 = vadd.f32 %v692, %v693
  %v695 = vrot.slane %v694, 1
  %v696 = vadd.f32 %v694, %v695
  %v697 = vmul.f32 %v683, %v67
  %v698 = vmul.f32 %v686, %v70
  %v699 = vadd.f32 %v697, %v698
  %v700 = vrot.slane %v699, 4
  %v701 = vadd.f32 %v699, %v700
  %v702 = vrot.slane %v701, 2
  %v703 = vadd.f32 %v701, %v702
  %v704 = vrot.slane %v703, 1
  %v705 = vadd.f32 %v703, %v704
  %v706 = vmul.f32 %v696, %v123
  %v707 = vmax.f32 %v706, 1e-12
  %v708 = vrsqrt.pop %v707
  %v709 = vmul.f32 %v708, %v707
  %v710 = vmul.f32 %v709, %v708
  %v711 = vmul.f32 0.5, %v710
  %v712 = vsub.f32 1.5, %v711
  %v713 = vmul.f32 %v708, %v712
  %vm714 = vweird.f32 %v707
  %vm715 = vweird.f32 %v708
  %vm716 = vmor %vm714, %vm715
  %v717 = vsel %vm716, %v708, %v713
  %v718 = vmul.f32 %v705, %v717
  %v719 = vmul.f32 %v683, %v167
  %v720 = vmul.f32 %v686, %v170
  %v721 = vadd.f32 %v719, %v720
  %v722 = vrot.slane %v721, 4
  %v723 = vadd.f32 %v721, %v722
  %v724 = vrot.slane %v723, 2
  %v725 = vadd.f32 %v723, %v724
  %v726 = vrot.slane %v725, 1
  %v727 = vadd.f32 %v725, %v726
  %v728 = vmul.f32 %v696, %v225
  %v729 = vmax.f32 %v728, 1e-12
  %v730 = vrsqrt.pop %v729
  %v731 = vmul.f32 %v730, %v729
  %v732 = vmul.f32 %v731, %v730
  %v733 = vmul.f32 0.5, %v732
  %v734 = vsub.f32 1.5, %v733
  %v735 = vmul.f32 %v730, %v734
  %vm736 = vweird.f32 %v729
  %vm737 = vweird.f32 %v730
  %vm738 = vmor %vm736, %vm737
  %v739 = vsel %vm738, %v730, %v735
  %v740 = vmul.f32 %v727, %v739
  %v741 = vmul.f32 %v683, %v271
  %v742 = vmul.f32 %v686, %v274
  %v743 = vadd.f32 %v741, %v742
  %v744 = vrot.slane %v743, 4
  %v745 = vadd.f32 %v743, %v744
  %v746 = vrot.slane %v745, 2
  %v747 = vadd.f32 %v745, %v746
  %v748 = vrot.slane %v747, 1
  %v749 = vadd.f32 %v747, %v748
  %v750 = vmul.f32 %v696, %v329
  %v751 = vmax.f32 %v750, 1e-12
  %v752 = vrsqrt.pop %v751
  %v753 = vmul.f32 %v752, %v751
  %v754 = vmul.f32 %v753, %v752
  %v755 = vmul.f32 0.5, %v754
  %v756 = vsub.f32 1.5, %v755
  %v757 = vmul.f32 %v752, %v756
  %vm758 = vweird.f32 %v751
  %vm759 = vweird.f32 %v752
  %vm760 = vmor %vm758, %vm759
  %v761 = vsel %vm760, %v752, %v757
  %v762 = vmul.f32 %v749, %v761
  %v763 = vmax.f32 %v718, %v740
  %v764 = vmax.f32 %v763, %v762
  %v765 = vsub.f32 %v718, %v764
  %v766 = vmul.f32 %v765, 1.442695
  %v767 = vpow.pop %v766
  %v768 = vsub.f32 %v740, %v764
  %v769 = vmul.f32 %v768, 1.442695
  %v770 = vpow.pop %v769
  %v771 = vsub.f32 %v762, %v764
  %v772 = vmul.f32 %v771, 1.442695
  %v773 = vpow.pop %v772
  %v774 = vadd.f32 %v767, %v770
  %v775 = vadd.f32 %v774, %v773
  %v776 = vrcp.pop %v775
  %v777 = vmul.f32 %v775, %v776
  %v778 = vsub.f32 1.0, %v777
  %v779 = vmul.f32 %v776, %v778
  %v780 = vadd.f32 %v776, %v779
  %vm781 = vweird.f32 %v775
  %vm782 = vweird.f32 %v776
  %vm783 = vmor %vm781, %vm782
  %v784 = vsel %vm783, %v776, %v780
  %v785 = vand.u32 2147483647, %v775
  %vm786 = vcmp.eq.f32.partialorder %v785, 8.507059e+37
  %v787 = vand.u32 %v775, 2147483648
  %v788 = vor.u32 1.1754944e-38, %v787
  %v789 = vsel %vm786, %v788, %v784
  %v790 = vmul.f32 %v767, %v789
  %v791 = vmul.f32 %v790, %v330
  %v792 = vmul.f32 %v790, %v331
  %v793 = vadd.f32 %v641, %v791
  %v794 = vadd.f32 %v642, %v792
  %s795 = scalar_lea.vmem %s7, 32
  %796 = vst [vmem:[%s795] sm:$0xff] %v793
  %797 = vst [vmem:[%s795 + $0x8] sm:$0xff] %v794
  // Predicated region
  $region30: #{multimodal_attention.1} parent=0 // pred_check
    _
  $region31: #{multimodal_attention.1} parent=0 // pred_check_branch
    %799 = sbr.rel (0) target = $region33
  $region32: #{multimodal_attention.1} parent=0 // pred_region
    _
  $region33: #{multimodal_attention.1} parent=0 // pred_fallthru
    _
  // Predicated region
  $region34: #{multimodal_attention.1} parent=0 // pred_check
    _
  $region35: #{multimodal_attention.1} parent=0 // pred_check_branch
    %801 = sbr.rel (0) target = $region37
  $region36: #{multimodal_attention.1} parent=0 // pred_region
    _
  $region37: #{multimodal_attention.1} parent=0 // pred_fallthru
    _

</llo_original>
